<compile_context>
chip_gen: v7x
topology: tpu7x:2x2x1
jax: 0.10.0
libtpu: 0.0.40
codegen_flags: <defaults>
</compile_context>

<pallas_src>
import functools

import jax
import jax.numpy as jnp
from jax.experimental import pallas as pl
from jax.experimental.pallas import tpu as pltpu


def _round_up(x, m):
    return (x + m - 1) // m * m


def _linear_kernel(x_ref, w_ref, b_ref, o_ref, acc_ref):
    # x_ref: (tm, tk), w_ref: (tk, tn), b_ref: (1, tn),
    # o_ref: (tm, tn), acc_ref: (tm, tn) f32 scratch.
    k = pl.program_id(2)

    @pl.when(k == 0)
    def _init():
        acc_ref[...] = jnp.zeros_like(acc_ref)

    acc_ref[...] += jnp.dot(
        x_ref[...], w_ref[...], preferred_element_type=jnp.float32)

    @pl.when(k == pl.num_programs(2) - 1)
    def _finalize():
        o_ref[...] = (acc_ref[...] + b_ref[...]).astype(o_ref.dtype)


def prepare_linear_params(weight, bias, *, tn=256, max_k_block=4096,
                          param_dtype=jnp.bfloat16):
    """One-time prep of the frozen linear-probe params (hoisted out of forward).

    weight: (num_labels, dim), bias: (num_labels,)
    Returns (w_p, b_p): transposed weight padded to (Kp, Np) in `param_dtype`
    and f32 bias padded to (1, Np).
    """
    num_labels, dim = weight.shape
    Np = _round_up(num_labels, tn)
    # Keep K unpadded when a single full-K block is used; pad to a 2048
    # multiple only when K will be split across grid steps.
    Kp = dim if dim <= max_k_block else _round_up(dim, 2048)

    wt = weight.astype(param_dtype).T                              # (dim, num_labels)
    w_p = jnp.zeros((Kp, Np), param_dtype).at[:dim, :num_labels].set(wt)
    b_p = jnp.zeros((1, Np), jnp.float32).at[0, :num_labels].set(
        bias.astype(jnp.float32))
    return w_p, b_p


@functools.partial(jax.jit, static_argnames=("num_labels", "tn", "max_k_block"))
def linear_classifier_forward(x, w_p, b_p, *, num_labels, tn=256,
                              max_k_block=4096):
    """Pallas forward: x (B, C, H, W) or (B, dim); prepared (w_p, b_p) params."""
    B = x.shape[0]
    x_flat = x.reshape(B, -1)
    dim = x_flat.shape[1]
    Kp, Np = w_p.shape
    assert Np % tn == 0, (Np, tn)
    assert Kp >= dim, (Kp, dim)

    # Match the (bf16) param dtype so W and x HBM traffic is halved; the MXU
    # still accumulates in f32 via preferred_element_type.
    x_flat = x_flat.astype(w_p.dtype)

    # M tiling: biggest tile up to 256 so W is re-streamed as rarely as possible.
    tm = min(256, _round_up(B, 8))
    Mp = _round_up(B, tm)

    # K tiling: single full-K block when it fits comfortably; otherwise split K
    # (accumulator pattern) to stay within v7x's 64 MiB VMEM.
    tk = Kp if Kp <= max_k_block else 2048
    assert Kp % tk == 0, (Kp, tk)

    # Pad activations only where needed (M remainder; K only if K was split).
    if Mp != B or Kp != dim:
        x_flat = jnp.pad(x_flat, ((0, Mp - B), (0, Kp - dim)))

    grid = (Mp // tm, Np // tn, Kp // tk)

    out_p = pl.pallas_call(
        _linear_kernel,
        out_shape=jax.ShapeDtypeStruct((Mp, Np), jnp.float32),
        grid_spec=pltpu.PrefetchScalarGridSpec(
            num_scalar_prefetch=0,
            grid=grid,
            in_specs=[
                pl.BlockSpec((tm, tk), lambda i, j, k: (i, k)),   # x tile
                pl.BlockSpec((tk, tn), lambda i, j, k: (k, j)),   # W tile
                pl.BlockSpec((1, tn), lambda i, j, k: (0, j)),    # bias tile
            ],
            out_specs=pl.BlockSpec((tm, tn), lambda i, j, k: (i, j)),
            scratch_shapes=[pltpu.VMEM((tm, tn), jnp.float32)],
        ),
        compiler_params=pltpu.CompilerParams(
            dimension_semantics=("parallel", "parallel", "arbitrary"),
            vmem_limit_bytes=48 * 1024 * 1024,  # > v5e 16 MiB default, < v7x 64 MiB phys
        ),
    )(x_flat, w_p, b_p)

    return out_p[:B, :num_labels]


def init_linear_classifier_params(key, dim, num_labels=1000):
    """Deterministic init matching the PyTorch module: W ~ N(0, 0.01), b = 0."""
    w = 0.01 * jax.random.normal(key, (num_labels, dim), dtype=jnp.float32)
    b = jnp.zeros((num_labels,), dtype=jnp.float32)
    return w, b


if __name__ == "__main__":
    key = jax.random.PRNGKey(0)
    k_x, k_w = jax.random.split(key)

    # Small synthetic input: NCHW frozen features (B=2, C=4, H=W=16) -> dim=1024.
    B, C, H, W = 2, 4, 16, 16
    dim = C * H * W
    num_labels = 1000

    x = jax.random.normal(k_x, (B, C, H, W), dtype=jnp.float32)
    weight, bias = init_linear_classifier_params(k_w, dim, num_labels)

    # Hoisted param prep: done ONCE, outside the (eval) hot loop.
    w_p, b_p = prepare_linear_params(weight, bias)

    out = linear_classifier_forward(x, w_p, b_p, num_labels=num_labels)
    jax.block_until_ready(out)

    # Reference: identical math on the bf16-rounded operands with f32 accumulation
    # (the kernel stores x/W in bf16 and accumulates in f32 on the MXU).
    xb = x.reshape(B, -1).astype(jnp.bfloat16).astype(jnp.float32)
    wb = weight.astype(jnp.bfloat16).astype(jnp.float32)
    ref = jnp.dot(xb, wb.T, precision=jax.lax.Precision.HIGHEST) + bias

    assert out.shape == (B, num_labels), out.shape
    max_err = float(jnp.max(jnp.abs(out - ref)))
    assert jnp.allclose(out, ref, atol=2e-3, rtol=2e-3), max_err

    print("KERNEL_OK")
</pallas_src>

<mosaic_0001>
module attributes {stable_mosaic.version = 11 : i64} {
  func.func @_linear_kernel(%arg0: i32, %arg1: i32, %arg2: i32, %arg3: memref<8x1024xbf16, #tpu.memory_space<vmem>>, %arg4: memref<1024x256xbf16, #tpu.memory_space<vmem>>, %arg5: memref<1x256xf32, #tpu.memory_space<vmem>>, %arg6: memref<8x256xf32, #tpu.memory_space<vmem>>, %arg7: memref<8x256xf32, #tpu.memory_space<vmem>>) attributes {dimension_semantics = [#tpu.dimension_semantics<parallel>, #tpu.dimension_semantics<parallel>, #tpu.dimension_semantics<arbitrary>], iteration_bounds = array<i64: 1, 4, 1>, scalar_prefetch = 0 : i64, scratch_operands = 1 : i64, tpu.core_type = #tpu.core_type<tc>, window_params = [{transform_indices = @transform_0, window_bounds = array<i64: 8, 1024>}, {transform_indices = @transform_1, window_bounds = array<i64: 1024, 256>}, {transform_indices = @transform_2, window_bounds = array<i64: 1, 256>}, {transform_indices = @transform_3, window_bounds = array<i64: 8, 256>}]} {
    %c0_i32 = arith.constant 0 : i32
    %0 = arith.cmpi eq, %arg2, %c0_i32 : i32
    %1 = arith.extui %0 : i1 to i32
    %c0_i32_0 = arith.constant 0 : i32
    %2 = arith.cmpi ne, %1, %c0_i32_0 : i32
    scf.if %2 {
      %cst_10 = arith.constant 0.000000e+00 : f32
      %12 = vector.broadcast %cst_10 : f32 to vector<8x256xf32>
      %c0_11 = arith.constant 0 : index
      %c0_12 = arith.constant 0 : index
      %13 = vector.load %arg7[%c0_11, %c0_12] : memref<8x256xf32, #tpu.memory_space<vmem>>, vector<8x256xf32>
      tpu.vector_store %arg7[%c0_11, %c0_12], %12 {strides = array<i32>} : memref<8x256xf32, #tpu.memory_space<vmem>>, vector<8x256xf32>,
    } else {
    }
    %c0 = arith.constant 0 : index
    %c0_1 = arith.constant 0 : index
    %3 = vector.load %arg7[%c0, %c0_1] : memref<8x256xf32, #tpu.memory_space<vmem>>, vector<8x256xf32>
    %c0_2 = arith.constant 0 : index
    %c0_3 = arith.constant 0 : index
    %4 = vector.load %arg3[%c0_2, %c0_3] : memref<8x1024xbf16, #tpu.memory_space<vmem>>, vector<8x1024xbf16>
    %c0_4 = arith.constant 0 : index
    %c0_5 = arith.constant 0 : index
    %5 = vector.load %arg4[%c0_4, %c0_5] : memref<1024x256xbf16, #tpu.memory_space<vmem>>, vector<1024x256xbf16>
    %cst = arith.constant dense<0.000000e+00> : vector<8x256xf32>
    %6 = tpu.matmul %4, %5, %cst {dimension_numbers = #tpu.dot_dimension_numbers<[1], [0], [0], [1], [0, 0, 1, 1], [], []>} : vector<8x1024xbf16>, vector<1024x256xbf16>, vector<8x256xf32> -> vector<8x256xf32>
    %7 = arith.addf %3, %6 : vector<8x256xf32>
    %c0_6 = arith.constant 0 : index
    %c0_7 = arith.constant 0 : index
    %8 = vector.load %arg7[%c0_6, %c0_7] : memref<8x256xf32, #tpu.memory_space<vmem>>, vector<8x256xf32>
    tpu.vector_store %arg7[%c0_6, %c0_7], %7 {strides = array<i32>} : memref<8x256xf32, #tpu.memory_space<vmem>>, vector<8x256xf32>,
    %c0_i32_8 = arith.constant 0 : i32
    %9 = arith.cmpi eq, %arg2, %c0_i32_8 : i32
    %10 = arith.extui %9 : i1 to i32
    %c0_i32_9 = arith.constant 0 : i32
    %11 = arith.cmpi ne, %10, %c0_i32_9 : i32
    scf.if %11 {
      %c0_10 = arith.constant 0 : index
      %c0_11 = arith.constant 0 : index
      %12 = vector.load %arg7[%c0_10, %c0_11] : memref<8x256xf32, #tpu.memory_space<vmem>>, vector<8x256xf32>
      %c0_12 = arith.constant 0 : index
      %c0_13 = arith.constant 0 : index
      %13 = vector.load %arg5[%c0_12, %c0_13] : memref<1x256xf32, #tpu.memory_space<vmem>>, vector<1x256xf32>
      %14 = vector.broadcast %13 : vector<1x256xf32> to vector<8x256xf32>
      %15 = arith.addf %12, %14 : vector<8x256xf32>
      %c0_14 = arith.constant 0 : index
      %c0_15 = arith.constant 0 : index
      %16 = vector.load %arg6[%c0_14, %c0_15] : memref<8x256xf32, #tpu.memory_space<vmem>>, vector<8x256xf32>
      tpu.vector_store %arg6[%c0_14, %c0_15], %15 {strides = array<i32>} : memref<8x256xf32, #tpu.memory_space<vmem>>, vector<8x256xf32>,
    } else {
    }
    return
  }
  func.func @transform_0(%arg0: i32, %arg1: i32, %arg2: i32) -> (i32, i32) {
    %c0_i32 = arith.constant 0 : i32
    return %arg0, %arg2 : i32, i32
  }
  func.func @transform_1(%arg0: i32, %arg1: i32, %arg2: i32) -> (i32, i32) {
    %c0_i32 = arith.constant 0 : i32
    return %arg2, %arg1 : i32, i32
  }
  func.func @transform_2(%arg0: i32, %arg1: i32, %arg2: i32) -> (i32, i32) {
    %c0_i32 = arith.constant 0 : i32
    %c0_i32_0 = arith.constant 0 : i32
    return %c0_i32, %arg1 : i32, i32
  }
  func.func @transform_3(%arg0: i32, %arg1: i32, %arg2: i32) -> (i32, i32) {
    %c0_i32 = arith.constant 0 : i32
    return %arg0, %arg1 : i32, i32
  }
}

</mosaic_0001>

<llo_original>
// kernel: linear_classifier_forward.1
$region0: #{linear_classifier_forward.1}
  #allocation0 [shape = 'u32[]', space=smem, size = 0x4, offset = 0x4, fixed_abs, tag = 'smem constant byte address 0x4 - core index']
  #allocation1 [shape = 'u32[144,128]{1,0:T(1,128)}', space=vmem, size = 0x12000, scoped, tag = 'internal scratch']
  #allocation2 [shape = 'f32[8,256]{1,0:T(8,128)}', space=vmem, size = 0x2000, scoped, tag = 'scratch operand']
  %s0 = inlined_call_operand.vmem [shape: bf16[8,1024], index: 0, kind: input, shape index: {}]
  %s1 = inlined_call_operand.hbm [shape: bf16[1024,1024], index: 1, kind: input, shape index: {}]
  %s2 = inlined_call_operand.hbm [shape: f32[1,1024], index: 2, kind: input, shape index: {}]
  %s3 = inlined_call_operand.vmem [shape: f32[8,1024], index: 3, kind: output, shape index: {}]
  %s4 = sld [smem:[#allocation0]]
  $region61: #{linear_classifier_forward.1} parent=0
    _
  %s6 = ssub.s32 1, %s4
  %s7 = scalar_select 0, %s6, %s4
  $region1: #{linear_classifier_forward.1} parent=0
    #allocation3 [shape = 'u8[1048576]{0}', space=vmem, size = 0x100000, scoped, tag = 'input window, operand 1']
    #allocation4 [shape = 's32[2]{0}', space=sflag, size = 0x8, scoped, tag = 'scoped memory for linear_classifier_forward.1']
    #allocation5 [shape = 'u8[2048]{0}', space=vmem, size = 0x800, scoped, tag = 'input window, operand 2']
    #allocation6 [shape = 's32[2]{0}', space=sflag, size = 0x8, scoped, tag = 'scoped memory for linear_classifier_forward.1']
    %8 = vsyncpa [#allocation4], 0
    %s9 = scalar_lea.sflag [#allocation4], 1
    %10 = vsyncpa %s9, 0
    %11 = vsyncpa [#allocation6], 0
    %s12 = scalar_lea.sflag [#allocation6], 1
    %13 = vsyncpa %s12, 0
    loop: start=0, step=1, limit=6
    $region2: #{linear_classifier_forward.1} parent=1 // loop_pre_header
      _
    $region3: #{linear_classifier_forward.1} parent=1 // loop_header
      %s15 = sphi 0, %s19
      %p16 = scmp.ge.s32.totalorder %s15, 6
      %s22 = sphi 0, %s41
      %s23 = sphi 0, %s37
      %s24 = sphi 0, %s33
      %s25 = sphi 0, %s22
      %s26 = sphi 0, %s23
      %s27 = sphi 0, %s24
      %s28 = sphi 0, %s25
      %s29 = sphi 0, %s26
      %s30 = sphi 0, %s27
      %s46 = sphi 0, %s48
      %s49 = sphi 0, %s46
      %s50 = sphi 0, %s49
      %s66 = sphi 0, %s50
      %s74 = sphi 0, %s76
      %s77 = sphi 0, %s74
      %s78 = sphi 0, %s77
      %s94 = sphi 0, %s78
      %s100 = sphi 0, %s102
      %s103 = sphi 0, %s100
      %s104 = sphi 0, %s103
      %s120 = sphi 0, %s104
      %s128 = sphi 0, %s130
      %s131 = sphi 0, %s128
      %s132 = sphi 0, %s131
      %s148 = sphi 0, %s132
    $region4: #{linear_classifier_forward.1} parent=1 // loop_header_branch
      %18 = sbr.rel (%p16) target = $region8
    $region5: #{linear_classifier_forward.1} parent=1 // loop_body
      %s20 = ssub.s32 %s15, 1
      %s21 = ssub.s32 %s15, 2
      %s31 = sadd.s32 1, %s24
      %p32 = scmp.ge.s32.totalorder %s31, 1
      %s33 = scalar_select %p32, 0, %s31
      %s34 = sadd.s32 1, %s23
      %s35 = scalar_select %p32, %s34, %s23
      %p36 = scmp.ge.s32.totalorder %s35, 4
      %s37 = scalar_select %p36, 0, %s35
      %s38 = sadd.s32 1, %s22
      %s39 = scalar_select %p36, %s38, %s22
      %p40 = scmp.ge.s32.totalorder %s39, 1
      %s41 = scalar_select %p40, 0, %s39
      %s42 = ssub.s32 %s22, %s41
      %s43 = ssub.s32 %s24, %s33
      %s44 = sor.u32 %s42, %s43
      %p45 = scmp.eq.s32.totalorder %s44, 0
      %s47 = sadd.s32 %s46, 1
      %s48 = scalar_select %p45, %s46, %s47
      %p51 = pneg %p45
      %p52 = scmp.eq.s32.totalorder %s15, 3
      %p53 = por %p51, %p52
      %p54 = scmp.ne.s32.totalorder %s46, %s49
      %p55 = scmp.eq.s32.totalorder %s15, 0
      %p56 = por %p54, %p55
      %p57 = scmp.ne.s32.totalorder %s46, %s49
      %p58 = scmp.eq.s32.totalorder %s20, 3
      %p59 = por %p57, %p58
      %p60 = scmp.ne.s32.totalorder %s49, %s50
      %p61 = scmp.eq.s32.totalorder %s20, 0
      %p62 = por %p60, %p61
      %p63 = scmp.ne.s32.totalorder %s49, %s50
      %p64 = scmp.eq.s32.totalorder %s21, 3
      %p65 = por %p63, %p64
      %p67 = scmp.ne.s32.totalorder %s50, %s66
      %p68 = scmp.eq.s32.totalorder %s21, 0
      %p69 = por %p67, %p68
      %s70 = ssub.s32 %s24, %s33
      %s71 = ssub.s32 %s23, %s37
      %s72 = sor.u32 %s70, %s71
      %p73 = scmp.eq.s32.totalorder %s72, 0
      %s75 = sadd.s32 %s74, 1
      %s76 = scalar_select %p73, %s74, %s75
      %p79 = pneg %p73
      %p80 = scmp.eq.s32.totalorder %s15, 3
      %p81 = por %p79, %p80
      %p82 = scmp.ne.s32.totalorder %s74, %s77
      %p83 = scmp.eq.s32.totalorder %s15, 0
      %p84 = por %p82, %p83
      %p85 = scmp.ne.s32.totalorder %s74, %s77
      %p86 = scmp.eq.s32.totalorder %s20, 3
      %p87 = por %p85, %p86
      %p88 = scmp.ne.s32.totalorder %s77, %s78
      %p89 = scmp.eq.s32.totalorder %s20, 0
      %p90 = por %p88, %p89
      %p91 = scmp.ne.s32.totalorder %s77, %s78
      %p92 = scmp.eq.s32.totalorder %s21, 3
      %p93 = por %p91, %p92
      %p95 = scmp.ne.s32.totalorder %s78, %s94
      %p96 = scmp.eq.s32.totalorder %s21, 0
      %p97 = por %p95, %p96
      %s98 = ssub.s32 %s23, %s37
      %p99 = scmp.eq.s32.totalorder %s98, 0
      %s101 = sadd.s32 %s100, 1
      %s102 = scalar_select %p99, %s100, %s101
      %p105 = pneg %p99
      %p106 = scmp.eq.s32.totalorder %s15, 3
      %p107 = por %p105, %p106
      %p108 = scmp.ne.s32.totalorder %s100, %s103
      %p109 = scmp.eq.s32.totalorder %s15, 0
      %p110 = por %p108, %p109
      %p111 = scmp.ne.s32.totalorder %s100, %s103
      %p112 = scmp.eq.s32.totalorder %s20, 3
      %p113 = por %p111, %p112
      %p114 = scmp.ne.s32.totalorder %s103, %s104
      %p115 = scmp.eq.s32.totalorder %s20, 0
      %p116 = por %p114, %p115
      %p117 = scmp.ne.s32.totalorder %s103, %s104
      %p118 = scmp.eq.s32.totalorder %s21, 3
      %p119 = por %p117, %p118
      %p121 = scmp.ne.s32.totalorder %s104, %s120
      %p122 = scmp.eq.s32.totalorder %s21, 0
      %p123 = por %p121, %p122
      %s124 = ssub.s32 %s22, %s41
      %s125 = ssub.s32 %s23, %s37
      %s126 = sor.u32 %s124, %s125
      %p127 = scmp.eq.s32.totalorder %s126, 0
      %s129 = sadd.s32 %s128, 1
      %s130 = scalar_select %p127, %s128, %s129
      %p133 = pneg %p127
      %p134 = scmp.eq.s32.totalorder %s15, 3
      %p135 = por %p133, %p134
      %p136 = scmp.ne.s32.totalorder %s128, %s131
      %p137 = scmp.eq.s32.totalorder %s15, 0
      %p138 = por %p136, %p137
      %p139 = scmp.ne.s32.totalorder %s128, %s131
      %p140 = scmp.eq.s32.totalorder %s20, 3
      %p141 = por %p139, %p140
      %p142 = scmp.ne.s32.totalorder %s131, %s132
      %p143 = scmp.eq.s32.totalorder %s20, 0
      %p144 = por %p142, %p143
      %p145 = scmp.ne.s32.totalorder %s131, %s132
      %p146 = scmp.eq.s32.totalorder %s21, 3
      %p147 = por %p145, %p146
      %p149 = scmp.ne.s32.totalorder %s132, %s148
      %p150 = scmp.eq.s32.totalorder %s21, 0
      %p151 = por %p149, %p150
      %p152 = scmp.le.s32.totalorder 1, %s15
      %p153 = scmp.lt.s32.totalorder %s15, 5
      %p154 = pnand %p152, %p153
      %p155 = pneg %p154
      // Predicated region
      $region9: #{linear_classifier_forward.1} parent=5 // pred_check
        _
      $region10: #{linear_classifier_forward.1} parent=5 // pred_check_branch
        %157 = sbr.rel (%p154) target = $region12
      $region11: #{linear_classifier_forward.1} parent=5 // pred_region
        %s158 = ssub.s32 %s15, 1
        // Predicated region
        $region13: #{linear_classifier_forward.1} parent=11 // pred_check
          %p159 = pneg %p62
        $region14: #{linear_classifier_forward.1} parent=11 // pred_check_branch
          %161 = sbr.rel (%p159) target = $region16
        $region15: #{linear_classifier_forward.1} parent=11 // pred_region
          %s162 = smul.u32 8, %s27
          %p163 = scmp.lt.s32.totalorder %s25, 0
          %s164 = scalar_select %p163, %s25, 0
          %p165 = scmp.lt.s32.totalorder %s162, 7
          %s166 = scalar_select %p165, %s162, 7
          %s167 = smul.addr %s164, 8
          %s168 = sadd.s32 %s166, %s167
          %s169 = smul.addr %s168, 4
          %s170 = scalar_lea.vmem %s0, %s169
          %s171 = smul.u32 8, %s27
        $region16: #{linear_classifier_forward.1} parent=11 // pred_fallthru
          _
      $region12: #{linear_classifier_forward.1} parent=5 // pred_fallthru
        _
      %p172 = scmp.lt.s32.totalorder %s15, 4
      // Predicated region
      $region17: #{linear_classifier_forward.1} parent=5 // pred_check
        %p173 = pneg %p172
      $region18: #{linear_classifier_forward.1} parent=5 // pred_check_branch
        %175 = sbr.rel (%p173) target = $region20
      $region19: #{linear_classifier_forward.1} parent=5 // pred_region
        // Predicated region
        $region21: #{linear_classifier_forward.1} parent=19 // pred_check
          %p176 = pneg %p84
        $region22: #{linear_classifier_forward.1} parent=19 // pred_check_branch
          %178 = sbr.rel (%p176) target = $region24
        $region23: #{linear_classifier_forward.1} parent=19 // pred_region
          %s179 = sand.u32 %s74, 1
          %s180 = scalar_lea.sflag [#allocation4], %s179
          %s181 = sand.u32 %s74, 1
          %s182 = smul.addr %s181, 1024
          %s183 = scalar_lea.vmem [#allocation3], %s182
          %s184 = smul.u32 128, %s24
          %s185 = smul.u32 2, %s23
          %s187 = ssub.s32 16384, 16384
          %188 = vsyncadd %s180, %s187
          %s189 = smul.addr %s184, 8
          %s190 = sadd.s32 %s185, %s189
          %s191 = smul.addr %s190, 64
          %s192 = scalar_lea.hbm %s1, %s191
          %s193 = sshll.u32 %s183, 4
          %s194 = int_to_ptr.vmem [resolvable:$true] %s193
          %199 = dma.hbm_to_vmem [thread:$0]  %s192, 16384, %s194, %s180, 512, 128, 8
        $region24: #{linear_classifier_forward.1} parent=19 // pred_fallthru
          _
        // Predicated region
        $region25: #{linear_classifier_forward.1} parent=19 // pred_check
          %p200 = pneg %p110
        $region26: #{linear_classifier_forward.1} parent=19 // pred_check_branch
          %202 = sbr.rel (%p200) target = $region28
        $region27: #{linear_classifier_forward.1} parent=19 // pred_region
          %s203 = sand.u32 %s100, 1
          %s204 = scalar_lea.sflag [#allocation6], %s203
          %s205 = sand.u32 %s100, 1
          %s206 = smul.addr %s205, 2
          %s207 = scalar_lea.vmem [#allocation5], %s206
          %s208 = smul.u32 2, %s23
          %s210 = ssub.s32 32, 32
          %211 = vsyncadd %s204, %s210
          %s212 = smul.addr %s208, 16
          %s213 = scalar_lea.hbm %s2, %s212
          %s215 = sshll.u32 %s207, 4
          %s216 = int_to_ptr.vmem [resolvable:$true] %s215
          %218 = dma.hbm_to_vmem [thread:$0]  %s213, 32, %s216, %s204
        $region28: #{linear_classifier_forward.1} parent=19 // pred_fallthru
          _
      $region20: #{linear_classifier_forward.1} parent=5 // pred_fallthru
        _
      %p219 = scmp.le.s32.totalorder 1, %s15
      %p220 = scmp.lt.s32.totalorder %s15, 5
      %p221 = pnand %p219, %p220
      %p222 = pneg %p221
      // Predicated region
      $region29: #{linear_classifier_forward.1} parent=5 // pred_check
        _
      $region30: #{linear_classifier_forward.1} parent=5 // pred_check_branch
        %224 = sbr.rel (%p221) target = $region32
      $region31: #{linear_classifier_forward.1} parent=5 // pred_region
        %s225 = ssub.s32 %s15, 1
        %s226 = sand.u32 %s77, 1
        %s227 = scalar_lea.sflag [#allocation4], %s226
        %s228 = sand.u32 %s77, 1
        %s229 = smul.addr %s228, 1024
        %s230 = scalar_lea.vmem [#allocation3], %s229
        // Predicated region
        $region33: #{linear_classifier_forward.1} parent=31 // pred_check
          %p231 = pneg %p90
        $region34: #{linear_classifier_forward.1} parent=31 // pred_check_branch
          %233 = sbr.rel (%p231) target = $region36
        $region35: #{linear_classifier_forward.1} parent=31 // pred_region
          %234 = dma.done %s227, 16384
        $region36: #{linear_classifier_forward.1} parent=31 // pred_fallthru
          _
        %s235 = sand.u32 %s103, 1
        %s236 = scalar_lea.sflag [#allocation6], %s235
        %s237 = sand.u32 %s103, 1
        %s238 = smul.addr %s237, 2
        %s239 = scalar_lea.vmem [#allocation5], %s238
        // Predicated region
        $region37: #{linear_classifier_forward.1} parent=31 // pred_check
          %p240 = pneg %p116
        $region38: #{linear_classifier_forward.1} parent=31 // pred_check_branch
          %242 = sbr.rel (%p240) target = $region40
        $region39: #{linear_classifier_forward.1} parent=31 // pred_region
          %243 = dma.done %s236, 32
        $region40: #{linear_classifier_forward.1} parent=31 // pred_fallthru
          _
        %s244 = smul.u32 8, %s27
        %p245 = scmp.lt.s32.totalorder %s25, 0
        %s246 = scalar_select %p245, %s25, 0
        %p247 = scmp.lt.s32.totalorder %s244, 7
        %s248 = scalar_select %p247, %s244, 7
        %s249 = smul.addr %s246, 8
        %s250 = sadd.s32 %s248, %s249
        %s251 = smul.addr %s250, 4
        %s252 = scalar_lea.vmem %s0, %s251
        %p253 = pneg %p62
        %p254 = pneg %p59
        %s255 = sand.u32 %s77, 1
        %s256 = scalar_lea.sflag [#allocation4], %s255
        %s257 = sand.u32 %s77, 1
        %s258 = smul.addr %s257, 1024
        %s259 = scalar_lea.vmem [#allocation3], %s258
        %p260 = pneg %p90
        %p261 = pneg %p87
        %s262 = sand.u32 %s103, 1
        %s263 = scalar_lea.sflag [#allocation6], %s262
        %s264 = sand.u32 %s103, 1
        %s265 = smul.addr %s264, 2
        %s266 = scalar_lea.vmem [#allocation5], %s265
        %p267 = pneg %p116
        %p268 = pneg %p113
        %p269 = pneg %p144
        %p270 = pneg %p141
        %s271 = smul.u32 2, %s26
        %p272 = scmp.lt.s32.totalorder %s25, 0
        %s273 = scalar_select %p272, %s25, 0
        %p274 = scmp.lt.s32.totalorder %s271, 7
        %s275 = scalar_select %p274, %s271, 7
        %s276 = smul.addr %s273, 8
        %s277 = sadd.s32 %s275, %s276
        %s278 = smul.addr %s277, 8
        %s279 = scalar_lea.vmem %s3, %s278
        %s280 = smul.u32 8, %s27
        %p281 = scmp.lt.s32.totalorder %s25, 0
        %s282 = scalar_select %p281, %s25, 0
        %p283 = scmp.lt.s32.totalorder %s280, 7
        %s284 = scalar_select %p283, %s280, 7
        %s285 = smul.addr %s282, 8
        %s286 = sadd.s32 %s284, %s285
        %s287 = smul.addr %s286, 4
        %s288 = scalar_lea.vmem %s0, %s287
        %s289 = smul.u32 8, %s27
        %s290 = smul.u32 128, %s27
        %s291 = smul.u32 2, %s26
        %s292 = smul.u32 2, %s26
        %s293 = smul.u32 2, %s26
        %p294 = scmp.lt.s32.totalorder %s25, 0
        %s295 = scalar_select %p294, %s25, 0
        %p296 = scmp.lt.s32.totalorder %s293, 7
        %s297 = scalar_select %p296, %s293, 7
        %s298 = smul.addr %s295, 8
        %s299 = sadd.s32 %s297, %s298
        %s300 = smul.addr %s299, 8
        %s301 = scalar_lea.vmem %s3, %s300
        %s302 = smul.u32 2, %s26
        %p303 = scmp.eq.s32.totalorder %s27, 0
        // Predicated region
        $region41: #{linear_classifier_forward.1} parent=31 // pred_check
          %p304 = pneg %p303
        $region42: #{linear_classifier_forward.1} parent=31 // pred_check_branch
          %306 = sbr.rel (%p304) target = $region44
        $region43: #{linear_classifier_forward.1} parent=31 // pred_region
          %307 = vst [vmem:[#allocation2] sm:$0xff] 0.0
          %308 = vst [vmem:[#allocation2 + $0x8] sm:$0xff] 0.0
        $region44: #{linear_classifier_forward.1} parent=31 // pred_fallthru
          _
        %v309 = vld [vmem:[#allocation2] sm:$0xff]
        %v310 = vld [vmem:[#allocation2 + $0x8] sm:$0xff]
        %v311 = vld [vmem:[%s288] sm:$0xff]
        %v312 = vld [vmem:[%s288 + $0x8] sm:$0xff]
        %v313 = vld [vmem:[%s288 + $0x10] sm:$0xff]
        %v314 = vld [vmem:[%s288 + $0x18] sm:$0xff]
        %v315 = vld [vmem:[%s230] sm:$0xff]
        %v316 = vld [vmem:[%s230 + $0x8] sm:$0xff]
        %v317 = vld [vmem:[%s230 + $0x10] sm:$0xff]
        %v318 = vld [vmem:[%s230 + $0x18] sm:$0xff]
        %v319 = vld [vmem:[%s230 + $0x20] sm:$0xff]
        %v320 = vld [vmem:[%s230 + $0x28] sm:$0xff]
        %v321 = vld [vmem:[%s230 + $0x30] sm:$0xff]
        %v322 = vld [vmem:[%s230 + $0x38] sm:$0xff]
        %v323 = vld [vmem:[%s230 + $0x40] sm:$0xff]
        %v324 = vld [vmem:[%s230 + $0x48] sm:$0xff]
        %v325 = vld [vmem:[%s230 + $0x50] sm:$0xff]
        %v326 = vld [vmem:[%s230 + $0x58] sm:$0xff]
        %v327 = vld [vmem:[%s230 + $0x60] sm:$0xff]
        %v328 = vld [vmem:[%s230 + $0x68] sm:$0xff]
        %v329 = vld [vmem:[%s230 + $0x70] sm:$0xff]
        %v330 = vld [vmem:[%s230 + $0x78] sm:$0xff]
        %v331 = vld [vmem:[%s230 + $0x80] sm:$0xff]
        %v332 = vld [vmem:[%s230 + $0x88] sm:$0xff]
        %v333 = vld [vmem:[%s230 + $0x90] sm:$0xff]
        %v334 = vld [vmem:[%s230 + $0x98] sm:$0xff]
        %v335 = vld [vmem:[%s230 + $0xa0] sm:$0xff]
        %v336 = vld [vmem:[%s230 + $0xa8] sm:$0xff]
        %v337 = vld [vmem:[%s230 + $0xb0] sm:$0xff]
        %v338 = vld [vmem:[%s230 + $0xb8] sm:$0xff]
        %v339 = vld [vmem:[%s230 + $0xc0] sm:$0xff]
        %v340 = vld [vmem:[%s230 + $0xc8] sm:$0xff]
        %v341 = vld [vmem:[%s230 + $0xd0] sm:$0xff]
        %v342 = vld [vmem:[%s230 + $0xd8] sm:$0xff]
        %v343 = vld [vmem:[%s230 + $0xe0] sm:$0xff]
        %v344 = vld [vmem:[%s230 + $0xe8] sm:$0xff]
        %v345 = vld [vmem:[%s230 + $0xf0] sm:$0xff]
        %v346 = vld [vmem:[%s230 + $0xf8] sm:$0xff]
        %v347 = vld [vmem:[%s230 + $0x100] sm:$0xff]
        %v348 = vld [vmem:[%s230 + $0x108] sm:$0xff]
        %v349 = vld [vmem:[%s230 + $0x110] sm:$0xff]
        %v350 = vld [vmem:[%s230 + $0x118] sm:$0xff]
        %v351 = vld [vmem:[%s230 + $0x120] sm:$0xff]
        %v352 = vld [vmem:[%s230 + $0x128] sm:$0xff]
        %v353 = vld [vmem:[%s230 + $0x130] sm:$0xff]
        %v354 = vld [vmem:[%s230 + $0x138] sm:$0xff]
        %v355 = vld [vmem:[%s230 + $0x140] sm:$0xff]
        %v356 = vld [vmem:[%s230 + $0x148] sm:$0xff]
        %v357 = vld [vmem:[%s230 + $0x150] sm:$0xff]
        %v358 = vld [vmem:[%s230 + $0x158] sm:$0xff]
        %v359 = vld [vmem:[%s230 + $0x160] sm:$0xff]
        %v360 = vld [vmem:[%s230 + $0x168] sm:$0xff]
        %v361 = vld [vmem:[%s230 + $0x170] sm:$0xff]
        %v362 = vld [vmem:[%s230 + $0x178] sm:$0xff]
        %v363 = vld [vmem:[%s230 + $0x180] sm:$0xff]
        %v364 = vld [vmem:[%s230 + $0x188] sm:$0xff]
        %v365 = vld [vmem:[%s230 + $0x190] sm:$0xff]
        %v366 = vld [vmem:[%s230 + $0x198] sm:$0xff]
        %v367 = vld [vmem:[%s230 + $0x1a0] sm:$0xff]
        %v368 = vld [vmem:[%s230 + $0x1a8] sm:$0xff]
        %v369 = vld [vmem:[%s230 + $0x1b0] sm:$0xff]
        %v370 = vld [vmem:[%s230 + $0x1b8] sm:$0xff]
        %v371 = vld [vmem:[%s230 + $0x1c0] sm:$0xff]
        %v372 = vld [vmem:[%s230 + $0x1c8] sm:$0xff]
        %v373 = vld [vmem:[%s230 + $0x1d0] sm:$0xff]
        %v374 = vld [vmem:[%s230 + $0x1d8] sm:$0xff]
        %v375 = vld [vmem:[%s230 + $0x1e0] sm:$0xff]
        %v376 = vld [vmem:[%s230 + $0x1e8] sm:$0xff]
        %v377 = vld [vmem:[%s230 + $0x1f0] sm:$0xff]
        %v378 = vld [vmem:[%s230 + $0x1f8] sm:$0xff]
        %v379 = vld [vmem:[%s230 + $0x200] sm:$0xff]
        %v380 = vld [vmem:[%s230 + $0x208] sm:$0xff]
        %v381 = vld [vmem:[%s230 + $0x210] sm:$0xff]
        %v382 = vld [vmem:[%s230 + $0x218] sm:$0xff]
        %v383 = vld [vmem:[%s230 + $0x220] sm:$0xff]
        %v384 = vld [vmem:[%s230 + $0x228] sm:$0xff]
        %v385 = vld [vmem:[%s230 + $0x230] sm:$0xff]
        %v386 = vld [vmem:[%s230 + $0x238] sm:$0xff]
        %v387 = vld [vmem:[%s230 + $0x240] sm:$0xff]
        %v388 = vld [vmem:[%s230 + $0x248] sm:$0xff]
        %v389 = vld [vmem:[%s230 + $0x250] sm:$0xff]
        %v390 = vld [vmem:[%s230 + $0x258] sm:$0xff]
        %v391 = vld [vmem:[%s230 + $0x260] sm:$0xff]
        %v392 = vld [vmem:[%s230 + $0x268] sm:$0xff]
        %v393 = vld [vmem:[%s230 + $0x270] sm:$0xff]
        %v394 = vld [vmem:[%s230 + $0x278] sm:$0xff]
        %v395 = vld [vmem:[%s230 + $0x280] sm:$0xff]
        %v396 = vld [vmem:[%s230 + $0x288] sm:$0xff]
        %v397 = vld [vmem:[%s230 + $0x290] sm:$0xff]
        %v398 = vld [vmem:[%s230 + $0x298] sm:$0xff]
        %v399 = vld [vmem:[%s230 + $0x2a0] sm:$0xff]
        %v400 = vld [vmem:[%s230 + $0x2a8] sm:$0xff]
        %v401 = vld [vmem:[%s230 + $0x2b0] sm:$0xff]
        %v402 = vld [vmem:[%s230 + $0x2b8] sm:$0xff]
        %v403 = vld [vmem:[%s230 + $0x2c0] sm:$0xff]
        %v404 = vld [vmem:[%s230 + $0x2c8] sm:$0xff]
        %v405 = vld [vmem:[%s230 + $0x2d0] sm:$0xff]
        %v406 = vld [vmem:[%s230 + $0x2d8] sm:$0xff]
        %v407 = vld [vmem:[%s230 + $0x2e0] sm:$0xff]
        %v408 = vld [vmem:[%s230 + $0x2e8] sm:$0xff]
        %v409 = vld [vmem:[%s230 + $0x2f0] sm:$0xff]
        %v410 = vld [vmem:[%s230 + $0x2f8] sm:$0xff]
        %v411 = vld [vmem:[%s230 + $0x300] sm:$0xff]
        %v412 = vld [vmem:[%s230 + $0x308] sm:$0xff]
        %v413 = vld [vmem:[%s230 + $0x310] sm:$0xff]
        %v414 = vld [vmem:[%s230 + $0x318] sm:$0xff]
        %v415 = vld [vmem:[%s230 + $0x320] sm:$0xff]
        %v416 = vld [vmem:[%s230 + $0x328] sm:$0xff]
        %v417 = vld [vmem:[%s230 + $0x330] sm:$0xff]
        %v418 = vld [vmem:[%s230 + $0x338] sm:$0xff]
        %v419 = vld [vmem:[%s230 + $0x340] sm:$0xff]
        %v420 = vld [vmem:[%s230 + $0x348] sm:$0xff]
        %v421 = vld [vmem:[%s230 + $0x350] sm:$0xff]
        %v422 = vld [vmem:[%s230 + $0x358] sm:$0xff]
        %v423 = vld [vmem:[%s230 + $0x360] sm:$0xff]
        %v424 = vld [vmem:[%s230 + $0x368] sm:$0xff]
        %v425 = vld [vmem:[%s230 + $0x370] sm:$0xff]
        %v426 = vld [vmem:[%s230 + $0x378] sm:$0xff]
        %v427 = vld [vmem:[%s230 + $0x380] sm:$0xff]
        %v428 = vld [vmem:[%s230 + $0x388] sm:$0xff]
        %v429 = vld [vmem:[%s230 + $0x390] sm:$0xff]
        %v430 = vld [vmem:[%s230 + $0x398] sm:$0xff]
        %v431 = vld [vmem:[%s230 + $0x3a0] sm:$0xff]
        %v432 = vld [vmem:[%s230 + $0x3a8] sm:$0xff]
        %v433 = vld [vmem:[%s230 + $0x3b0] sm:$0xff]
        %v434 = vld [vmem:[%s230 + $0x3b8] sm:$0xff]
        %v435 = vld [vmem:[%s230 + $0x3c0] sm:$0xff]
        %v436 = vld [vmem:[%s230 + $0x3c8] sm:$0xff]
        %v437 = vld [vmem:[%s230 + $0x3d0] sm:$0xff]
        %v438 = vld [vmem:[%s230 + $0x3d8] sm:$0xff]
        %v439 = vld [vmem:[%s230 + $0x3e0] sm:$0xff]
        %v440 = vld [vmem:[%s230 + $0x3e8] sm:$0xff]
        %v441 = vld [vmem:[%s230 + $0x3f0] sm:$0xff]
        %v442 = vld [vmem:[%s230 + $0x3f8] sm:$0xff]
        %v447 = vunpack.c.l.b16 %v311
        %v448 = vunpack.c.h.b16 %v311
        %v449 = vunpack.c.l.b16 %v312
        %v450 = vunpack.c.h.b16 %v312
        %v451 = vunpack.c.l.b16 %v313
        %v452 = vunpack.c.h.b16 %v313
        %v453 = vunpack.c.l.b16 %v314
        %v454 = vunpack.c.h.b16 %v314
        %v455 = vpack.c.b16 %v447, %v447
        %v456 = vpack.c.b16 %v448, %v448
        %v457 = vpack.c.b16 %v449, %v449
        %v458 = vpack.c.b16 %v450, %v450
        %v459 = vpack.c.b16 %v451, %v451
        %v460 = vpack.c.b16 %v452, %v452
        %v461 = vpack.c.b16 %v453, %v453
        %v462 = vpack.c.b16 %v454, %v454
        %v599 = vunpack.c.l.b16 %v315
        %v600 = vunpack.c.h.b16 %v315
        %v601 = vunpack.c.l.b16 %v316
        %v602 = vunpack.c.h.b16 %v316
        %v603 = vunpack.c.l.b16 %v317
        %v604 = vunpack.c.h.b16 %v317
        %v605 = vunpack.c.l.b16 %v318
        %v606 = vunpack.c.h.b16 %v318
        %v607 = vunpack.c.l.b16 %v319
        %v608 = vunpack.c.h.b16 %v319
        %v609 = vunpack.c.l.b16 %v320
        %v610 = vunpack.c.h.b16 %v320
        %v611 = vunpack.c.l.b16 %v321
        %v612 = vunpack.c.h.b16 %v321
        %v613 = vunpack.c.l.b16 %v322
        %v614 = vunpack.c.h.b16 %v322
        %v615 = vunpack.c.l.b16 %v323
        %v616 = vunpack.c.h.b16 %v323
        %v617 = vunpack.c.l.b16 %v324
        %v618 = vunpack.c.h.b16 %v324
        %v619 = vunpack.c.l.b16 %v325
        %v620 = vunpack.c.h.b16 %v325
        %v621 = vunpack.c.l.b16 %v326
        %v622 = vunpack.c.h.b16 %v326
        %v623 = vunpack.c.l.b16 %v327
        %v624 = vunpack.c.h.b16 %v327
        %v625 = vunpack.c.l.b16 %v328
        %v626 = vunpack.c.h.b16 %v328
        %v627 = vunpack.c.l.b16 %v329
        %v628 = vunpack.c.h.b16 %v329
        %v629 = vunpack.c.l.b16 %v330
        %v630 = vunpack.c.h.b16 %v330
        %v631 = vunpack.c.l.b16 %v331
        %v632 = vunpack.c.h.b16 %v331
        %v633 = vunpack.c.l.b16 %v332
        %v634 = vunpack.c.h.b16 %v332
        %v635 = vunpack.c.l.b16 %v333
        %v636 = vunpack.c.h.b16 %v333
        %v637 = vunpack.c.l.b16 %v334
        %v638 = vunpack.c.h.b16 %v334
        %v639 = vunpack.c.l.b16 %v335
        %v640 = vunpack.c.h.b16 %v335
        %v641 = vunpack.c.l.b16 %v336
        %v642 = vunpack.c.h.b16 %v336
        %v643 = vunpack.c.l.b16 %v337
        %v644 = vunpack.c.h.b16 %v337
        %v645 = vunpack.c.l.b16 %v338
        %v646 = vunpack.c.h.b16 %v338
        %v647 = vunpack.c.l.b16 %v339
        %v648 = vunpack.c.h.b16 %v339
        %v649 = vunpack.c.l.b16 %v340
        %v650 = vunpack.c.h.b16 %v340
        %v651 = vunpack.c.l.b16 %v341
        %v652 = vunpack.c.h.b16 %v341
        %v653 = vunpack.c.l.b16 %v342
        %v654 = vunpack.c.h.b16 %v342
        %v655 = vunpack.c.l.b16 %v343
        %v656 = vunpack.c.h.b16 %v343
        %v657 = vunpack.c.l.b16 %v344
        %v658 = vunpack.c.h.b16 %v344
        %v659 = vunpack.c.l.b16 %v345
        %v660 = vunpack.c.h.b16 %v345
        %v661 = vunpack.c.l.b16 %v346
        %v662 = vunpack.c.h.b16 %v346
        %v663 = vunpack.c.l.b16 %v347
        %v664 = vunpack.c.h.b16 %v347
        %v665 = vunpack.c.l.b16 %v348
        %v666 = vunpack.c.h.b16 %v348
        %v667 = vunpack.c.l.b16 %v349
        %v668 = vunpack.c.h.b16 %v349
        %v669 = vunpack.c.l.b16 %v350
        %v670 = vunpack.c.h.b16 %v350
        %v671 = vunpack.c.l.b16 %v351
        %v672 = vunpack.c.h.b16 %v351
        %v673 = vunpack.c.l.b16 %v352
        %v674 = vunpack.c.h.b16 %v352
        %v675 = vunpack.c.l.b16 %v353
        %v676 = vunpack.c.h.b16 %v353
        %v677 = vunpack.c.l.b16 %v354
        %v678 = vunpack.c.h.b16 %v354
        %v679 = vunpack.c.l.b16 %v355
        %v680 = vunpack.c.h.b16 %v355
        %v681 = vunpack.c.l.b16 %v356
        %v682 = vunpack.c.h.b16 %v356
        %v683 = vunpack.c.l.b16 %v357
        %v684 = vunpack.c.h.b16 %v357
        %v685 = vunpack.c.l.b16 %v358
        %v686 = vunpack.c.h.b16 %v358
        %v687 = vunpack.c.l.b16 %v359
        %v688 = vunpack.c.h.b16 %v359
        %v689 = vunpack.c.l.b16 %v360
        %v690 = vunpack.c.h.b16 %v360
        %v691 = vunpack.c.l.b16 %v361
        %v692 = vunpack.c.h.b16 %v361
        %v693 = vunpack.c.l.b16 %v362
        %v694 = vunpack.c.h.b16 %v362
        %v695 = vunpack.c.l.b16 %v363
        %v696 = vunpack.c.h.b16 %v363
        %v697 = vunpack.c.l.b16 %v364
        %v698 = vunpack.c.h.b16 %v364
        %v699 = vunpack.c.l.b16 %v365
        %v700 = vunpack.c.h.b16 %v365
        %v701 = vunpack.c.l.b16 %v366
        %v702 = vunpack.c.h.b16 %v366
        %v703 = vunpack.c.l.b16 %v367
        %v704 = vunpack.c.h.b16 %v367
        %v705 = vunpack.c.l.b16 %v368
        %v706 = vunpack.c.h.b16 %v368
        %v707 = vunpack.c.l.b16 %v369
        %v708 = vunpack.c.h.b16 %v369
        %v709 = vunpack.c.l.b16 %v370
        %v710 = vunpack.c.h.b16 %v370
        %v711 = vunpack.c.l.b16 %v371
        %v712 = vunpack.c.h.b16 %v371
        %v713 = vunpack.c.l.b16 %v372
        %v714 = vunpack.c.h.b16 %v372
        %v715 = vunpack.c.l.b16 %v373
        %v716 = vunpack.c.h.b16 %v373
        %v717 = vunpack.c.l.b16 %v374
        %v718 = vunpack.c.h.b16 %v374
        %v719 = vunpack.c.l.b16 %v375
        %v720 = vunpack.c.h.b16 %v375
        %v721 = vunpack.c.l.b16 %v376
        %v722 = vunpack.c.h.b16 %v376
        %v723 = vunpack.c.l.b16 %v377
        %v724 = vunpack.c.h.b16 %v377
        %v725 = vunpack.c.l.b16 %v378
        %v726 = vunpack.c.h.b16 %v378
        %v727 = vunpack.c.l.b16 %v379
        %v728 = vunpack.c.h.b16 %v379
        %v729 = vunpack.c.l.b16 %v380
        %v730 = vunpack.c.h.b16 %v380
        %v731 = vunpack.c.l.b16 %v381
        %v732 = vunpack.c.h.b16 %v381
        %v733 = vunpack.c.l.b16 %v382
        %v734 = vunpack.c.h.b16 %v382
        %v735 = vunpack.c.l.b16 %v383
        %v736 = vunpack.c.h.b16 %v383
        %v737 = vunpack.c.l.b16 %v384
        %v738 = vunpack.c.h.b16 %v384
        %v739 = vunpack.c.l.b16 %v385
        %v740 = vunpack.c.h.b16 %v385
        %v741 = vunpack.c.l.b16 %v386
        %v742 = vunpack.c.h.b16 %v386
        %v743 = vunpack.c.l.b16 %v387
        %v744 = vunpack.c.h.b16 %v387
        %v745 = vunpack.c.l.b16 %v388
        %v746 = vunpack.c.h.b16 %v388
        %v747 = vunpack.c.l.b16 %v389
        %v748 = vunpack.c.h.b16 %v389
        %v749 = vunpack.c.l.b16 %v390
        %v750 = vunpack.c.h.b16 %v390
        %v751 = vunpack.c.l.b16 %v391
        %v752 = vunpack.c.h.b16 %v391
        %v753 = vunpack.c.l.b16 %v392
        %v754 = vunpack.c.h.b16 %v392
        %v755 = vunpack.c.l.b16 %v393
        %v756 = vunpack.c.h.b16 %v393
        %v757 = vunpack.c.l.b16 %v394
        %v758 = vunpack.c.h.b16 %v394
        %v759 = vunpack.c.l.b16 %v395
        %v760 = vunpack.c.h.b16 %v395
        %v761 = vunpack.c.l.b16 %v396
        %v762 = vunpack.c.h.b16 %v396
        %v763 = vunpack.c.l.b16 %v397
        %v764 = vunpack.c.h.b16 %v397
        %v765 = vunpack.c.l.b16 %v398
        %v766 = vunpack.c.h.b16 %v398
        %v767 = vunpack.c.l.b16 %v399
        %v768 = vunpack.c.h.b16 %v399
        %v769 = vunpack.c.l.b16 %v400
        %v770 = vunpack.c.h.b16 %v400
        %v771 = vunpack.c.l.b16 %v401
        %v772 = vunpack.c.h.b16 %v401
        %v773 = vunpack.c.l.b16 %v402
        %v774 = vunpack.c.h.b16 %v402
        %v775 = vunpack.c.l.b16 %v403
        %v776 = vunpack.c.h.b16 %v403
        %v777 = vunpack.c.l.b16 %v404
        %v778 = vunpack.c.h.b16 %v404
        %v779 = vunpack.c.l.b16 %v405
        %v780 = vunpack.c.h.b16 %v405
        %v781 = vunpack.c.l.b16 %v406
        %v782 = vunpack.c.h.b16 %v406
        %v783 = vunpack.c.l.b16 %v407
        %v784 = vunpack.c.h.b16 %v407
        %v785 = vunpack.c.l.b16 %v408
        %v786 = vunpack.c.h.b16 %v408
        %v787 = vunpack.c.l.b16 %v409
        %v788 = vunpack.c.h.b16 %v409
        %v789 = vunpack.c.l.b16 %v410
        %v790 = vunpack.c.h.b16 %v410
        %v791 = vunpack.c.l.b16 %v411
        %v792 = vunpack.c.h.b16 %v411
        %v793 = vunpack.c.l.b16 %v412
        %v794 = vunpack.c.h.b16 %v412
        %v795 = vunpack.c.l.b16 %v413
        %v796 = vunpack.c.h.b16 %v413
        %v797 = vunpack.c.l.b16 %v414
        %v798 = vunpack.c.h.b16 %v414
        %v799 = vunpack.c.l.b16 %v415
        %v800 = vunpack.c.h.b16 %v415
        %v801 = vunpack.c.l.b16 %v416
        %v802 = vunpack.c.h.b16 %v416
        %v803 = vunpack.c.l.b16 %v417
        %v804 = vunpack.c.h.b16 %v417
        %v805 = vunpack.c.l.b16 %v418
        %v806 = vunpack.c.h.b16 %v418
        %v807 = vunpack.c.l.b16 %v419
        %v808 = vunpack.c.h.b16 %v419
        %v809 = vunpack.c.l.b16 %v420
        %v810 = vunpack.c.h.b16 %v420
        %v811 = vunpack.c.l.b16 %v421
        %v812 = vunpack.c.h.b16 %v421
        %v813 = vunpack.c.l.b16 %v422
        %v814 = vunpack.c.h.b16 %v422
        %v815 = vunpack.c.l.b16 %v423
        %v816 = vunpack.c.h.b16 %v423
        %v817 = vunpack.c.l.b16 %v424
        %v818 = vunpack.c.h.b16 %v424
        %v819 = vunpack.c.l.b16 %v425
        %v820 = vunpack.c.h.b16 %v425
        %v821 = vunpack.c.l.b16 %v426
        %v822 = vunpack.c.h.b16 %v426
        %v823 = vunpack.c.l.b16 %v427
        %v824 = vunpack.c.h.b16 %v427
        %v825 = vunpack.c.l.b16 %v428
        %v826 = vunpack.c.h.b16 %v428
        %v827 = vunpack.c.l.b16 %v429
        %v828 = vunpack.c.h.b16 %v429
        %v829 = vunpack.c.l.b16 %v430
        %v830 = vunpack.c.h.b16 %v430
        %v831 = vunpack.c.l.b16 %v431
        %v832 = vunpack.c.h.b16 %v431
        %v833 = vunpack.c.l.b16 %v432
        %v834 = vunpack.c.h.b16 %v432
        %v835 = vunpack.c.l.b16 %v433
        %v836 = vunpack.c.h.b16 %v433
        %v837 = vunpack.c.l.b16 %v434
        %v838 = vunpack.c.h.b16 %v434
        %v839 = vunpack.c.l.b16 %v435
        %v840 = vunpack.c.h.b16 %v435
        %v841 = vunpack.c.l.b16 %v436
        %v842 = vunpack.c.h.b16 %v436
        %v843 = vunpack.c.l.b16 %v437
        %v844 = vunpack.c.h.b16 %v437
        %v845 = vunpack.c.l.b16 %v438
        %v846 = vunpack.c.h.b16 %v438
        %v847 = vunpack.c.l.b16 %v439
        %v848 = vunpack.c.h.b16 %v439
        %v849 = vunpack.c.l.b16 %v440
        %v850 = vunpack.c.h.b16 %v440
        %v851 = vunpack.c.l.b16 %v441
        %v852 = vunpack.c.h.b16 %v441
        %v853 = vunpack.c.l.b16 %v442
        %v854 = vunpack.c.h.b16 %v442
        %v855 = vpack.c.b16 %v601, %v599
        %v856 = vpack.c.b16 %v602, %v600
        %v857 = vpack.c.b16 %v605, %v603
        %v858 = vpack.c.b16 %v606, %v604
        %v859 = vpack.c.b16 %v609, %v607
        %v860 = vpack.c.b16 %v610, %v608
        %v861 = vpack.c.b16 %v613, %v611
        %v862 = vpack.c.b16 %v614, %v612
        %v863 = vpack.c.b16 %v617, %v615
        %v864 = vpack.c.b16 %v618, %v616
        %v865 = vpack.c.b16 %v621, %v619
        %v866 = vpack.c.b16 %v622, %v620
        %v867 = vpack.c.b16 %v625, %v623
        %v868 = vpack.c.b16 %v626, %v624
        %v869 = vpack.c.b16 %v629, %v627
        %v870 = vpack.c.b16 %v630, %v628
        %v871 = vpack.c.b16 %v633, %v631
        %v872 = vpack.c.b16 %v634, %v632
        %v873 = vpack.c.b16 %v637, %v635
        %v874 = vpack.c.b16 %v638, %v636
        %v875 = vpack.c.b16 %v641, %v639
        %v876 = vpack.c.b16 %v642, %v640
        %v877 = vpack.c.b16 %v645, %v643
        %v878 = vpack.c.b16 %v646, %v644
        %v879 = vpack.c.b16 %v649, %v647
        %v880 = vpack.c.b16 %v650, %v648
        %v881 = vpack.c.b16 %v653, %v651
        %v882 = vpack.c.b16 %v654, %v652
        %v883 = vpack.c.b16 %v657, %v655
        %v884 = vpack.c.b16 %v658, %v656
        %v885 = vpack.c.b16 %v661, %v659
        %v886 = vpack.c.b16 %v662, %v660
        %v887 = vpack.c.b16 %v665, %v663
        %v888 = vpack.c.b16 %v666, %v664
        %v889 = vpack.c.b16 %v669, %v667
        %v890 = vpack.c.b16 %v670, %v668
        %v891 = vpack.c.b16 %v673, %v671
        %v892 = vpack.c.b16 %v674, %v672
        %v893 = vpack.c.b16 %v677, %v675
        %v894 = vpack.c.b16 %v678, %v676
        %v895 = vpack.c.b16 %v681, %v679
        %v896 = vpack.c.b16 %v682, %v680
        %v897 = vpack.c.b16 %v685, %v683
        %v898 = vpack.c.b16 %v686, %v684
        %v899 = vpack.c.b16 %v689, %v687
        %v900 = vpack.c.b16 %v690, %v688
        %v901 = vpack.c.b16 %v693, %v691
        %v902 = vpack.c.b16 %v694, %v692
        %v903 = vpack.c.b16 %v697, %v695
        %v904 = vpack.c.b16 %v698, %v696
        %v905 = vpack.c.b16 %v701, %v699
        %v906 = vpack.c.b16 %v702, %v700
        %v907 = vpack.c.b16 %v705, %v703
        %v908 = vpack.c.b16 %v706, %v704
        %v909 = vpack.c.b16 %v709, %v707
        %v910 = vpack.c.b16 %v710, %v708
        %v911 = vpack.c.b16 %v713, %v711
        %v912 = vpack.c.b16 %v714, %v712
        %v913 = vpack.c.b16 %v717, %v715
        %v914 = vpack.c.b16 %v718, %v716
        %v915 = vpack.c.b16 %v721, %v719
        %v916 = vpack.c.b16 %v722, %v720
        %v917 = vpack.c.b16 %v725, %v723
        %v918 = vpack.c.b16 %v726, %v724
        %v919 = vpack.c.b16 %v729, %v727
        %v920 = vpack.c.b16 %v730, %v728
        %v921 = vpack.c.b16 %v733, %v731
        %v922 = vpack.c.b16 %v734, %v732
        %v923 = vpack.c.b16 %v737, %v735
        %v924 = vpack.c.b16 %v738, %v736
        %v925 = vpack.c.b16 %v741, %v739
        %v926 = vpack.c.b16 %v742, %v740
        %v927 = vpack.c.b16 %v745, %v743
        %v928 = vpack.c.b16 %v746, %v744
        %v929 = vpack.c.b16 %v749, %v747
        %v930 = vpack.c.b16 %v750, %v748
        %v931 = vpack.c.b16 %v753, %v751
        %v932 = vpack.c.b16 %v754, %v752
        %v933 = vpack.c.b16 %v757, %v755
        %v934 = vpack.c.b16 %v758, %v756
        %v935 = vpack.c.b16 %v761, %v759
        %v936 = vpack.c.b16 %v762, %v760
        %v937 = vpack.c.b16 %v765, %v763
        %v938 = vpack.c.b16 %v766, %v764
        %v939 = vpack.c.b16 %v769, %v767
        %v940 = vpack.c.b16 %v770, %v768
        %v941 = vpack.c.b16 %v773, %v771
        %v942 = vpack.c.b16 %v774, %v772
        %v943 = vpack.c.b16 %v777, %v775
        %v944 = vpack.c.b16 %v778, %v776
        %v945 = vpack.c.b16 %v781, %v779
        %v946 = vpack.c.b16 %v782, %v780
        %v947 = vpack.c.b16 %v785, %v783
        %v948 = vpack.c.b16 %v786, %v784
        %v949 = vpack.c.b16 %v789, %v787
        %v950 = vpack.c.b16 %v790, %v788
        %v951 = vpack.c.b16 %v793, %v791
        %v952 = vpack.c.b16 %v794, %v792
        %v953 = vpack.c.b16 %v797, %v795
        %v954 = vpack.c.b16 %v798, %v796
        %v955 = vpack.c.b16 %v801, %v799
        %v956 = vpack.c.b16 %v802, %v800
        %v957 = vpack.c.b16 %v805, %v803
        %v958 = vpack.c.b16 %v806, %v804
        %v959 = vpack.c.b16 %v809, %v807
        %v960 = vpack.c.b16 %v810, %v808
        %v961 = vpack.c.b16 %v813, %v811
        %v962 = vpack.c.b16 %v814, %v812
        %v963 = vpack.c.b16 %v817, %v815
        %v964 = vpack.c.b16 %v818, %v816
        %v965 = vpack.c.b16 %v821, %v819
        %v966 = vpack.c.b16 %v822, %v820
        %v967 = vpack.c.b16 %v825, %v823
        %v968 = vpack.c.b16 %v826, %v824
        %v969 = vpack.c.b16 %v829, %v827
        %v970 = vpack.c.b16 %v830, %v828
        %v971 = vpack.c.b16 %v833, %v831
        %v972 = vpack.c.b16 %v834, %v832
        %v973 = vpack.c.b16 %v837, %v835
        %v974 = vpack.c.b16 %v838, %v836
        %v975 = vpack.c.b16 %v841, %v839
        %v976 = vpack.c.b16 %v842, %v840
        %v977 = vpack.c.b16 %v845, %v843
        %v978 = vpack.c.b16 %v846, %v844
        %v979 = vpack.c.b16 %v849, %v847
        %v980 = vpack.c.b16 %v850, %v848
        %v981 = vpack.c.b16 %v853, %v851
        %v982 = vpack.c.b16 %v854, %v852
        %1111 = vmatprep.subr.bf16.mxu0 %v856
        %1112 = vmatpush1.bf16.msra.mxu0 %v855
        %1113 = vmatprep.subr.bf16.mxu0 %v858
        %1114 = vmatpush1.bf16.msra.mxu0 %v857
        %1115 = vmatprep.subr.bf16.mxu0 %v860
        %1116 = vmatpush1.bf16.msra.mxu0 %v859
        %1117 = vmatprep.subr.bf16.mxu0 %v862
        %1118 = vmatpush1.bf16.msra.mxu0 %v861
        %1119 = vmatprep.subr.bf16.mxu0 %v864
        %1120 = vmatpush1.bf16.msra.mxu0 %v863
        %1121 = vmatprep.subr.bf16.mxu0 %v866
        %1122 = vmatpush1.bf16.msra.mxu0 %v865
        %1123 = vmatprep.subr.bf16.mxu0 %v868
        %1124 = vmatpush1.bf16.msra.mxu0 %v867
        %1125 = vmatprep.subr.bf16.mxu0 %v870
        %1126 = vmatpush1.bf16.msra.mxu0 %v869
        %1127 = vmatprep.subr.bf16.mxu0 %v872
        %1128 = vmatpush1.bf16.msra.mxu0 %v871
        %1129 = vmatprep.subr.bf16.mxu0 %v874
        %1130 = vmatpush1.bf16.msra.mxu0 %v873
        %1131 = vmatprep.subr.bf16.mxu0 %v876
        %1132 = vmatpush1.bf16.msra.mxu0 %v875
        %1133 = vmatprep.subr.bf16.mxu0 %v878
        %1134 = vmatpush1.bf16.msra.mxu0 %v877
        %1135 = vmatprep.subr.bf16.mxu0 %v880
        %1136 = vmatpush1.bf16.msra.mxu0 %v879
        %1137 = vmatprep.subr.bf16.mxu0 %v882
        %1138 = vmatpush1.bf16.msra.mxu0 %v881
        %1139 = vmatprep.subr.bf16.mxu0 %v884
        %1140 = vmatpush1.bf16.msra.mxu0 %v883
        %1141 = vmatprep.subr.bf16.mxu0 %v886
        %1142 = vmatpush1.bf16.msra.mxu0 %v885
        %1143 = vmatprep.mubr.bf16.mxu0 %v456
        %1144 = vmatmul.mubr.bf16.gmra.mrb[0].mxu0 %v455
        %v1145 = vpop.f32.mrb[0].mxu0
        %v1146 = vadd.f32 0.0, %v1145
        %v1147 = vpop.f32.mrb[0].mxu0
        %v1148 = vadd.f32 0.0, %v1147
        %v1149 = vpop.f32.mrb[0].mxu0
        %v1150 = vpop.f32.mrb[0].mxu0
        %1151 = vdwg.mxu0
        %1152 = vmatprep.subr.bf16.mxu0 %v888
        %1153 = vmatpush1.bf16.msra.mxu0 %v887
        %1154 = vmatprep.subr.bf16.mxu0 %v890
        %1155 = vmatpush1.bf16.msra.mxu0 %v889
        %1156 = vmatprep.subr.bf16.mxu0 %v892
        %1157 = vmatpush1.bf16.msra.mxu0 %v891
        %1158 = vmatprep.subr.bf16.mxu0 %v894
        %1159 = vmatpush1.bf16.msra.mxu0 %v893
        %1160 = vmatprep.subr.bf16.mxu0 %v896
        %1161 = vmatpush1.bf16.msra.mxu0 %v895
        %1162 = vmatprep.subr.bf16.mxu0 %v898
        %1163 = vmatpush1.bf16.msra.mxu0 %v897
        %1164 = vmatprep.subr.bf16.mxu0 %v900
        %1165 = vmatpush1.bf16.msra.mxu0 %v899
        %1166 = vmatprep.subr.bf16.mxu0 %v902
        %1167 = vmatpush1.bf16.msra.mxu0 %v901
        %1168 = vmatprep.subr.bf16.mxu0 %v904
        %1169 = vmatpush1.bf16.msra.mxu0 %v903
        %1170 = vmatprep.subr.bf16.mxu0 %v906
        %1171 = vmatpush1.bf16.msra.mxu0 %v905
        %1172 = vmatprep.subr.bf16.mxu0 %v908
        %1173 = vmatpush1.bf16.msra.mxu0 %v907
        %1174 = vmatprep.subr.bf16.mxu0 %v910
        %1175 = vmatpush1.bf16.msra.mxu0 %v909
        %1176 = vmatprep.subr.bf16.mxu0 %v912
        %1177 = vmatpush1.bf16.msra.mxu0 %v911
        %1178 = vmatprep.subr.bf16.mxu0 %v914
        %1179 = vmatpush1.bf16.msra.mxu0 %v913
        %1180 = vmatprep.subr.bf16.mxu0 %v916
        %1181 = vmatpush1.bf16.msra.mxu0 %v915
        %1182 = vmatprep.subr.bf16.mxu0 %v918
        %1183 = vmatpush1.bf16.msra.mxu0 %v917
        %1184 = vmatprep.mubr.bf16.mxu0 %v458
        %1185 = vmatmul.mubr.bf16.gmra.mrb[0].mxu0 %v457
        %v1186 = vpop.f32.mrb[0].mxu0
        %v1187 = vadd.f32 %v1146, %v1186
        %v1188 = vpop.f32.mrb[0].mxu0
        %v1189 = vadd.f32 %v1148, %v1188
        %v1190 = vpop.f32.mrb[0].mxu0
        %v1191 = vpop.f32.mrb[0].mxu0
        %1192 = vdwg.mxu0
        %1193 = vmatprep.subr.bf16.mxu0 %v920
        %1194 = vmatpush1.bf16.msra.mxu0 %v919
        %1195 = vmatprep.subr.bf16.mxu0 %v922
        %1196 = vmatpush1.bf16.msra.mxu0 %v921
        %1197 = vmatprep.subr.bf16.mxu0 %v924
        %1198 = vmatpush1.bf16.msra.mxu0 %v923
        %1199 = vmatprep.subr.bf16.mxu0 %v926
        %1200 = vmatpush1.bf16.msra.mxu0 %v925
        %1201 = vmatprep.subr.bf16.mxu0 %v928
        %1202 = vmatpush1.bf16.msra.mxu0 %v927
        %1203 = vmatprep.subr.bf16.mxu0 %v930
        %1204 = vmatpush1.bf16.msra.mxu0 %v929
        %1205 = vmatprep.subr.bf16.mxu0 %v932
        %1206 = vmatpush1.bf16.msra.mxu0 %v931
        %1207 = vmatprep.subr.bf16.mxu0 %v934
        %1208 = vmatpush1.bf16.msra.mxu0 %v933
        %1209 = vmatprep.subr.bf16.mxu0 %v936
        %1210 = vmatpush1.bf16.msra.mxu0 %v935
        %1211 = vmatprep.subr.bf16.mxu0 %v938
        %1212 = vmatpush1.bf16.msra.mxu0 %v937
        %1213 = vmatprep.subr.bf16.mxu0 %v940
        %1214 = vmatpush1.bf16.msra.mxu0 %v939
        %1215 = vmatprep.subr.bf16.mxu0 %v942
        %1216 = vmatpush1.bf16.msra.mxu0 %v941
        %1217 = vmatprep.subr.bf16.mxu0 %v944
        %1218 = vmatpush1.bf16.msra.mxu0 %v943
        %1219 = vmatprep.subr.bf16.mxu0 %v946
        %1220 = vmatpush1.bf16.msra.mxu0 %v945
        %1221 = vmatprep.subr.bf16.mxu0 %v948
        %1222 = vmatpush1.bf16.msra.mxu0 %v947
        %1223 = vmatprep.subr.bf16.mxu0 %v950
        %1224 = vmatpush1.bf16.msra.mxu0 %v949
        %1225 = vmatprep.mubr.bf16.mxu0 %v460
        %1226 = vmatmul.mubr.bf16.gmra.mrb[0].mxu0 %v459
        %v1227 = vpop.f32.mrb[0].mxu0
        %v1228 = vadd.f32 %v1187, %v1227
        %v1229 = vpop.f32.mrb[0].mxu0
        %v1230 = vadd.f32 %v1189, %v1229
        %v1231 = vpop.f32.mrb[0].mxu0
        %v1232 = vpop.f32.mrb[0].mxu0
        %1233 = vdwg.mxu0
        %1234 = vmatprep.subr.bf16.mxu0 %v952
        %1235 = vmatpush1.bf16.msra.mxu0 %v951
        %1236 = vmatprep.subr.bf16.mxu0 %v954
        %1237 = vmatpush1.bf16.msra.mxu0 %v953
        %1238 = vmatprep.subr.bf16.mxu0 %v956
        %1239 = vmatpush1.bf16.msra.mxu0 %v955
        %1240 = vmatprep.subr.bf16.mxu0 %v958
        %1241 = vmatpush1.bf16.msra.mxu0 %v957
        %1242 = vmatprep.subr.bf16.mxu0 %v960
        %1243 = vmatpush1.bf16.msra.mxu0 %v959
        %1244 = vmatprep.subr.bf16.mxu0 %v962
        %1245 = vmatpush1.bf16.msra.mxu0 %v961
        %1246 = vmatprep.subr.bf16.mxu0 %v964
        %1247 = vmatpush1.bf16.msra.mxu0 %v963
        %1248 = vmatprep.subr.bf16.mxu0 %v966
        %1249 = vmatpush1.bf16.msra.mxu0 %v965
        %1250 = vmatprep.subr.bf16.mxu0 %v968
        %1251 = vmatpush1.bf16.msra.mxu0 %v967
        %1252 = vmatprep.subr.bf16.mxu0 %v970
        %1253 = vmatpush1.bf16.msra.mxu0 %v969
        %1254 = vmatprep.subr.bf16.mxu0 %v972
        %1255 = vmatpush1.bf16.msra.mxu0 %v971
        %1256 = vmatprep.subr.bf16.mxu0 %v974
        %1257 = vmatpush1.bf16.msra.mxu0 %v973
        %1258 = vmatprep.subr.bf16.mxu0 %v976
        %1259 = vmatpush1.bf16.msra.mxu0 %v975
        %1260 = vmatprep.subr.bf16.mxu0 %v978
        %1261 = vmatpush1.bf16.msra.mxu0 %v977
        %1262 = vmatprep.subr.bf16.mxu0 %v980
        %1263 = vmatpush1.bf16.msra.mxu0 %v979
        %1264 = vmatprep.subr.bf16.mxu0 %v982
        %1265 = vmatpush1.bf16.msra.mxu0 %v981
        %1266 = vmatprep.mubr.bf16.mxu0 %v462
        %1267 = vmatmul.mubr.bf16.gmra.mrb[0].mxu0 %v461
        %v1268 = vpop.f32.mrb[0].mxu0
        %v1269 = vadd.f32 %v1228, %v1268
        %v1270 = vpop.f32.mrb[0].mxu0
        %v1271 = vadd.f32 %v1230, %v1270
        %v1272 = vpop.f32.mrb[0].mxu0
        %v1273 = vpop.f32.mrb[0].mxu0
        %1274 = vdwg.mxu0
        %v1275 = vadd.f32 %v309, %v1269
        %v1276 = vadd.f32 %v310, %v1271
        %1277 = vst [vmem:[#allocation2] sm:$0xff] %v1275
        %1278 = vst [vmem:[#allocation2 + $0x8] sm:$0xff] %v1276
        // Predicated region
        $region45: #{linear_classifier_forward.1} parent=31 // pred_check
          %p1279 = pneg %p303
        $region46: #{linear_classifier_forward.1} parent=31 // pred_check_branch
          %1281 = sbr.rel (%p1279) target = $region48
        $region47: #{linear_classifier_forward.1} parent=31 // pred_region
          %v1282 = vld [vmem:[#allocation2] sm:$0xff]
          %v1283 = vld [vmem:[#allocation2 + $0x8] sm:$0xff]
          %v1284 = vld [vmem:[%s239] sm:$0x3]
          %v1286 = vlaneseq
          %v1287 = vshrl.u32 %v1286, 7
          %v1288 = vsub.s32 0, %v1287
          %v1289 = vrot.slane %v1284, %v1288
          %v1290 = vlaneseq
          %v1291 = vshrl.u32 %v1290, 7
          %v1292 = vsub.s32 1, %v1291
          %v1293 = vrot.slane %v1284, %v1292
          %v1296 = vadd.f32 %v1282, %v1289
          %v1297 = vadd.f32 %v1283, %v1293
          %1298 = vst [vmem:[%s301] sm:$0xff] %v1296
          %1299 = vst [vmem:[%s301 + $0x8] sm:$0xff] %v1297
        $region48: #{linear_classifier_forward.1} parent=31 // pred_fallthru
          _
        %s1300 = smul.u32 2, %s26
        %p1301 = scmp.lt.s32.totalorder %s25, 0
        %s1302 = scalar_select %p1301, %s25, 0
        %p1303 = scmp.lt.s32.totalorder %s1300, 7
        %s1304 = scalar_select %p1303, %s1300, 7
        %s1305 = smul.addr %s1302, 8
        %s1306 = sadd.s32 %s1304, %s1305
        %s1307 = smul.addr %s1306, 8
        %s1308 = scalar_lea.vmem %s3, %s1307
        // Predicated region
        $region49: #{linear_classifier_forward.1} parent=31 // pred_check
          %p1309 = pneg %p141
        $region50: #{linear_classifier_forward.1} parent=31 // pred_check_branch
          %1311 = sbr.rel (%p1309) target = $region52
        $region51: #{linear_classifier_forward.1} parent=31 // pred_region
          %s1312 = smul.u32 2, %s26
        $region52: #{linear_classifier_forward.1} parent=31 // pred_fallthru
          _
      $region32: #{linear_classifier_forward.1} parent=5 // pred_fallthru
        _
      %p1313 = scmp.le.s32.totalorder 2, %s15
      // Predicated region
      $region53: #{linear_classifier_forward.1} parent=5 // pred_check
        %p1314 = pneg %p1313
      $region54: #{linear_classifier_forward.1} parent=5 // pred_check_branch
        %1316 = sbr.rel (%p1314) target = $region56
      $region55: #{linear_classifier_forward.1} parent=5 // pred_region
        %s1317 = ssub.s32 %s15, 2
        // Predicated region
        $region57: #{linear_classifier_forward.1} parent=55 // pred_check
          %p1318 = pneg %p147
        $region58: #{linear_classifier_forward.1} parent=55 // pred_check_branch
          %1320 = sbr.rel (%p1318) target = $region60
        $region59: #{linear_classifier_forward.1} parent=55 // pred_region
          %s1321 = smul.u32 2, %s29
          %p1322 = scmp.lt.s32.totalorder %s28, 0
          %s1323 = scalar_select %p1322, %s28, 0
          %p1324 = scmp.lt.s32.totalorder %s1321, 7
          %s1325 = scalar_select %p1324, %s1321, 7
          %s1326 = smul.addr %s1323, 8
          %s1327 = sadd.s32 %s1325, %s1326
          %s1328 = smul.addr %s1327, 8
          %s1329 = scalar_lea.vmem %s3, %s1328
        $region60: #{linear_classifier_forward.1} parent=55 // pred_fallthru
          _
      $region56: #{linear_classifier_forward.1} parent=5 // pred_fallthru
        _
    $region6: #{linear_classifier_forward.1} parent=1 // loop_footer
      %s19 = sadd.s32 1, %s15
    $region7: #{linear_classifier_forward.1} parent=1 // loop_footer_branch
      %14 = sbr.rel target = $region3
    $region8: #{linear_classifier_forward.1} parent=1 // loop_exit
      _
    %1330 = vsyncpa [#allocation4], 1
    %s1331 = scalar_lea.sflag [#allocation4], 1
    %1332 = vsyncpa %s1331, 1
    %1333 = vsyncpa [#allocation6], 1
    %s1334 = scalar_lea.sflag [#allocation6], 1
    %1335 = vsyncpa %s1334, 1

</llo_original>
